<compile_context>
chip_gen: v7x
topology: tpu7x:2x2x1
jax: 0.10.0
libtpu: 0.0.40
codegen_flags: <defaults>
</compile_context>

<pallas_src>
import jax
import jax.numpy as jnp
from jax import lax
from jax.experimental import pallas as pl
from jax.experimental.pallas import tpu as pltpu

TRANSFORMER_DIM = 32          # transformer_dim
HIDDEN_DIM = 32               # smpl_head_hidden_dim (small demo config)
POSE_DIM = 22 * 6             # 132
SHAPE_DIM = 10
TRANSL_DIM = 2
DEPTH_DIM = 1
INVERSE_DEPTH = False         # matches default construction used here

HEADS = ("pose", "shape", "transl", "depth")
HEAD_OUT = (POSE_DIM, SHAPE_DIM, TRANSL_DIM, DEPTH_DIM)

# lane offsets of each head inside the fused layer-3 output / packed output slab
_offs, _o = [], 0
for _d in HEAD_OUT:
    _offs.append(_o)
    _o += _d
HEAD_OFF = tuple(_offs)        # (0, 132, 142, 144)
RAW_OUT = _o                   # 145 = 132 + 10 + 2 + 1
PX_LANE = HEAD_OFF[2]          # 142
PY_LANE = HEAD_OFF[2] + 1      # 143
PZ_LANE = HEAD_OFF[3]          # 144
TRANSL_OFF = RAW_OUT           # decoded transl occupies lanes [145, 148)
PACKED_OUT = 256               # lane-dense output width (multiple of 128)

FUSED_HID = 4 * HIDDEN_DIM     # 128 fused hidden lanes (one MXU push wide)
FUSED_IN = 2 * TRANSFORMER_DIM  # 64 lane-stacked [smpl | loc] input lanes


# ---------------------------------------------------------------------------
# Pallas kernel: fused 4-head MLP (3 matmuls) + decode_transl, 1 packed store.
# ---------------------------------------------------------------------------
def smpl_heads_kernel(focal_ref, x_ref, w1_ref, w23_ref, bias_ref, out_ref):
    x = x_ref[...]                                     # (R, 64)  bf16
    w1 = w1_ref[...]                                   # (64, 4H) bf16
    w2 = w23_ref[:, :FUSED_HID]                        # (4H, 4H) bf16, block-diag
    w3 = w23_ref[:, FUSED_HID:]                        # (4H, 256) bf16, block-diag
    b1 = bias_ref[:, 0:FUSED_HID]                      # (1, 4H) f32
    b2 = bias_ref[:, FUSED_HID:2 * FUSED_HID]          # (1, 4H) f32
    b3 = bias_ref[:, 2 * FUSED_HID:]                   # (1, 256) f32 (init folded in)

    h = jnp.maximum(
        jnp.dot(x, w1, preferred_element_type=jnp.float32) + b1, 0.0)
    h = jnp.maximum(
        jnp.dot(h.astype(jnp.bfloat16), w2, preferred_element_type=jnp.float32) + b2,
        0.0)
    y = jnp.dot(h.astype(jnp.bfloat16), w3,
                preferred_element_type=jnp.float32) + b3        # (R, 256) f32

    R = y.shape[0]
    lane = lax.broadcasted_iota(jnp.int32, (R, PACKED_OUT), 1)

    # Pull px / py / pz as (R, 1) via masked cross-lane reduces (no narrow
    # unaligned lane slices).
    px = jnp.sum(jnp.where(lane == PX_LANE, y, 0.0), axis=-1, keepdims=True)
    py = jnp.sum(jnp.where(lane == PY_LANE, y, 0.0), axis=-1, keepdims=True)
    pz = jnp.sum(jnp.where(lane == PZ_LANE, y, 0.0), axis=-1, keepdims=True)

    if INVERSE_DEPTH:                                  # static flag
        pz = pl.reciprocal(pz + 1e-6, approx=True)     # EUP slot

    focal = focal_ref[0, 0]                            # SMEM scalar
    tx = px * pz
    ty = py * pz
    tz = pz * (focal * (1.0 / 1000.0))

    transl_vals = jnp.where(lane == TRANSL_OFF, tx,
                            jnp.where(lane == TRANSL_OFF + 1, ty, tz))

    # lanes [0,145): pose|shape|transl_c|depth_c  /  [145,148): decoded transl
    # / [148,256): zero padding.  Single unmasked lane-dense store.
    out_ref[...] = jnp.where(lane < RAW_OUT, y,
                             jnp.where(lane < TRANSL_OFF + 3, transl_vals, 0.0))


def _heads_pallas(packed, smpl_token, loc_token, focal):
    B = smpl_token.shape[0]
    R = ((B + 7) // 8) * 8                            # pad rows to 8 sublanes
    # Lane-stacked activation slab: lanes [0,32)=smpl_token, [32,64)=loc_token.
    x = jnp.concatenate([smpl_token, loc_token], axis=1).astype(jnp.bfloat16)
    if R != B:
        x = jnp.pad(x, ((0, R - B), (0, 0)))

    flops = 2 * R * (FUSED_IN * FUSED_HID
                     + FUSED_HID * FUSED_HID
                     + FUSED_HID * PACKED_OUT)
    bytes_accessed = (R * FUSED_IN * 2                      # x (bf16)
                      + FUSED_IN * FUSED_HID * 2            # w1 (bf16)
                      + FUSED_HID * (FUSED_HID + PACKED_OUT) * 2   # w23 (bf16)
                      + (2 * FUSED_HID + PACKED_OUT) * 4    # bias (f32)
                      + R * PACKED_OUT * 4                  # output (f32)
                      + 4)                                  # focal scalar

    # TODO(synk): if many persons/frames are processed, batch their tokens into
    # one call (rows >= 256) and add a parallel row-grid axis; at B=2 a single
    # gridless program is the right shape.
    out = pl.pallas_call(
        smpl_heads_kernel,
        out_shape=jax.ShapeDtypeStruct((R, PACKED_OUT), jnp.float32),
        in_specs=[
            pl.BlockSpec(memory_space=pltpu.MemorySpace.SMEM),   # focal scalar
            pl.BlockSpec(memory_space=pltpu.MemorySpace.VMEM),   # x (R, 64)
            pl.BlockSpec(memory_space=pltpu.MemorySpace.VMEM),   # w1
            pl.BlockSpec(memory_space=pltpu.MemorySpace.VMEM),   # w23
            pl.BlockSpec(memory_space=pltpu.MemorySpace.VMEM),   # bias slab
        ],
        out_specs=pl.BlockSpec(memory_space=pltpu.MemorySpace.VMEM),
        cost_estimate=pl.CostEstimate(flops=flops, transcendentals=0,
                                      bytes_accessed=bytes_accessed),
    )(focal, x, packed["w1"], packed["w23"], packed["bias"])

    out = out[:B]
    pose = out[:, HEAD_OFF[0]:HEAD_OFF[0] + POSE_DIM]
    shape = out[:, HEAD_OFF[1]:HEAD_OFF[1] + SHAPE_DIM]
    transl_c = out[:, HEAD_OFF[2]:HEAD_OFF[2] + TRANSL_DIM]
    depth_c = out[:, HEAD_OFF[3]:HEAD_OFF[3] + DEPTH_DIM]
    transl = out[:, TRANSL_OFF:TRANSL_OFF + 3]
    return pose, shape, transl, transl_c, depth_c


# ---------------------------------------------------------------------------
# One-time parameter packing (lane-stacked layer 1, block-diag layers 2/3,
# init buffers folded into the layer-3 bias, matmul weights in bf16).
# ---------------------------------------------------------------------------
def pack_head_params(params):
    H = HIDDEN_DIM
    IN = TRANSFORMER_DIM
    # layer 1: (2*IN, 4H). smpl lanes (rows 0:IN) feed pose/shape columns,
    # loc lanes (rows IN:2*IN) feed transl/depth columns; zeros elsewhere.
    w1 = jnp.zeros((2 * IN, 4 * H), jnp.float32)
    w1 = w1.at[:IN, 0 * H:1 * H].set(params["pose_w0"])
    w1 = w1.at[:IN, 1 * H:2 * H].set(params["shape_w0"])
    w1 = w1.at[IN:, 2 * H:3 * H].set(params["transl_w0"])
    w1 = w1.at[IN:, 3 * H:4 * H].set(params["depth_w0"])
    b1 = jnp.concatenate([params[f"{h}_b0"] for h in HEADS], axis=1)

    # layer 2: block-diagonal (4H, 4H).
    # NOTE: fine at this size (4H=128 -> 32 KiB bf16). For a large real config
    # (H >= 1024) switch layer 2 to four per-head (H, H) matmuls on 128-aligned
    # lane slices instead of a 75%-zero slab (v7x has only 64 MiB VMEM).
    w2 = jnp.zeros((4 * H, 4 * H), jnp.float32)
    for i, h in enumerate(HEADS):
        w2 = w2.at[i * H:(i + 1) * H, i * H:(i + 1) * H].set(params[f"{h}_w1"])
    b2 = jnp.concatenate([params[f"{h}_b1"] for h in HEADS], axis=1)

    # layer 3: block-diagonal (4H, 256), init_* buffers folded into the bias
    w3 = jnp.zeros((4 * H, PACKED_OUT), jnp.float32)
    b3 = jnp.zeros((1, PACKED_OUT), jnp.float32)
    inits = ("init_pose", "init_betas", "init_transl", "init_depth")
    for i, (h, od, off, init) in enumerate(zip(HEADS, HEAD_OUT, HEAD_OFF, inits)):
        w3 = w3.at[i * H:(i + 1) * H, off:off + od].set(params[f"{h}_w2"])
        b3 = b3.at[:, off:off + od].set(params[f"{h}_b2"] + params[init])

    w23 = jnp.concatenate([w2, w3], axis=1)          # (4H, 4H + 256)
    bias = jnp.concatenate([b1, b2, b3], axis=1)     # (1, 8H + 256) = (1, 512)
    return {"w1": w1.astype(jnp.bfloat16),
            "w23": w23.astype(jnp.bfloat16),
            "bias": bias.astype(jnp.float32)}


# ---------------------------------------------------------------------------
# Glue (plain JAX): token assembly, stand-in transformer, decode dispatch.
# ---------------------------------------------------------------------------
def standin_transformer(src, pos_src, tokens, crossperson=False):
    # TODO(synk): the real `transformer` is an injected nn.Module (SAM-style
    # two-way transformer) that is not defined in the source; a deterministic
    # single cross-attention block is used here as a stand-in.
    B, C, H, W = src.shape
    kv = (src + pos_src).reshape(B, C, H * W).transpose(0, 2, 1)      # (B, HW, C)
    attn = jnp.einsum("bnc,bmc->bnm", tokens, kv) / jnp.sqrt(jnp.float32(C))
    attn = jax.nn.softmax(attn, axis=-1)
    hs = tokens + jnp.einsum("bnm,bmc->bnc", attn, kv)
    return hs, src


def smpl_decoder_forward(params, packed, cam_int, image_embeddings, image_pe,
                         sparse_prompt_embeddings, dense_prompt_embeddings,
                         crossperson=False):
    B = sparse_prompt_embeddings.shape[0]
    output_tokens = jnp.broadcast_to(
        params["smpl_token"][None], (B,) + params["smpl_token"].shape)
    tokens = jnp.concatenate([output_tokens, sparse_prompt_embeddings], axis=1)

    src = jnp.repeat(image_embeddings, B, axis=0)
    pos_src = jnp.repeat(image_pe, B, axis=0)
    if dense_prompt_embeddings is not None:
        src = src + dense_prompt_embeddings

    hs, src = standin_transformer(src, pos_src, tokens, crossperson=crossperson)

    smpl_token = hs[:, 0, :]
    loc_token = hs[:, 1, :]
    features = hs[:, :2, :]

    # Matches PyTorch decode_transl: cam_int.squeeze()[0, 0] -> first camera's
    # fx is used for every sample (same behavior/limitation as the reference).
    focal = jnp.squeeze(cam_int)[0, 0].reshape(1, 1).astype(jnp.float32)

    pose, shape, transl, transl_c, depth_c = _heads_pallas(
        packed, smpl_token, loc_token, focal)
    return pose, shape, transl, transl_c, depth_c, features


# ---------------------------------------------------------------------------
# Deterministic parameter construction (synthetic weights).
# ---------------------------------------------------------------------------
def make_params(key):
    params = {}
    k_tok, key = jax.random.split(key)
    params["smpl_token"] = 0.1 * jax.random.normal(
        k_tok, (2, TRANSFORMER_DIM), jnp.float32)

    head_dims = {
        "pose": POSE_DIM, "shape": SHAPE_DIM, "transl": TRANSL_DIM, "depth": DEPTH_DIM,
    }
    for name, out_dim in head_dims.items():
        dims = [TRANSFORMER_DIM, HIDDEN_DIM, HIDDEN_DIM, out_dim]
        for layer in range(3):
            key, kw = jax.random.split(key)
            fan_in, fan_out = dims[layer], dims[layer + 1]
            scale = 0.01 if layer == 2 else 0.05   # xavier(gain=.01)-ish last layer
            params[f"{name}_w{layer}"] = scale * jax.random.normal(
                kw, (fan_in, fan_out), jnp.float32)
            params[f"{name}_b{layer}"] = jnp.zeros((1, fan_out), jnp.float32)

    # register_buffer equivalents
    params["init_pose"] = jnp.concatenate(
        [jnp.array([[1.0, 0, 0, 0, -1, 0]], jnp.float32),
         jnp.tile(jnp.array([[1.0, 0, 0, 0, 1, 0]], jnp.float32), (1, 21))],
        axis=1)                                                    # (1, 132)
    params["init_betas"] = jnp.zeros((1, SHAPE_DIM), jnp.float32)
    params["init_transl"] = jnp.zeros((1, TRANSL_DIM), jnp.float32)
    params["init_depth"] = (jnp.array([[1.0 / 10.0]], jnp.float32)
                            if INVERSE_DEPTH else jnp.array([[10.0]], jnp.float32))
    return params


# ---------------------------------------------------------------------------
# Pure-JAX reference of the Pallas-side compute (mirrors the kernel's bf16
# weight/activation quantization with f32 accumulation).
# ---------------------------------------------------------------------------
def _heads_reference(params, smpl_token, loc_token, focal):
    def q(a):
        return a.astype(jnp.bfloat16).astype(jnp.float32)

    def mlp(x, name):
        h = x
        for layer in range(3):
            h = q(h) @ q(params[f"{name}_w{layer}"]) + params[f"{name}_b{layer}"]
            if layer < 2:
                h = jnp.maximum(h, 0.0)
        return h

    pose = mlp(smpl_token, "pose") + params["init_pose"]
    shape = mlp(smpl_token, "shape") + params["init_betas"]
    transl_c = mlp(loc_token, "transl") + params["init_transl"]
    depth_c = mlp(loc_token, "depth") + params["init_depth"]
    pz = depth_c[:, 0]
    if INVERSE_DEPTH:
        pz = 1.0 / (pz + 1e-6)
    tx = transl_c[:, 0] * pz
    ty = transl_c[:, 1] * pz
    tz = pz * focal[0, 0] / 1000.0
    transl = jnp.stack([tx, ty, tz], axis=-1)
    return pose, shape, transl, transl_c, depth_c


if __name__ == "__main__":
    key = jax.random.PRNGKey(0)
    params = make_params(key)
    packed = pack_head_params(params)        # one-time fused-weight packing

    k1, k2, k3, k4 = jax.random.split(jax.random.PRNGKey(0), 4)
    B, C, H, W = 2, TRANSFORMER_DIM, 8, 8
    cam_int = jnp.array([[[800.0, 0.0, 128.0],
                          [0.0, 800.0, 128.0],
                          [0.0, 0.0, 1.0]]], jnp.float32)          # (1, 3, 3)
    image_embeddings = jax.random.normal(k1, (1, C, H, W), jnp.float32)
    image_pe = jax.random.normal(k2, (1, C, H, W), jnp.float32)
    sparse_prompt_embeddings = jax.random.normal(k3, (B, 2, C), jnp.float32)
    dense_prompt_embeddings = jax.random.normal(k4, (B, C, H, W), jnp.float32)

    outs = smpl_decoder_forward(params, packed, cam_int, image_embeddings,
                                image_pe, sparse_prompt_embeddings,
                                dense_prompt_embeddings, crossperson=False)
    outs = jax.block_until_ready(outs)
    pose, shape, transl, transl_c, depth_c, features = outs

    # sanity check the Pallas hot path against plain JAX
    tokens = jnp.concatenate(
        [jnp.broadcast_to(params["smpl_token"][None], (B, 2, C)),
         sparse_prompt_embeddings], axis=1)
    src = jnp.repeat(image_embeddings, B, axis=0) + dense_prompt_embeddings
    pos_src = jnp.repeat(image_pe, B, axis=0)
    hs, _ = standin_transformer(src, pos_src, tokens)
    focal = jnp.squeeze(cam_int)[0, 0].reshape(1, 1)
    refs = _heads_reference(params, hs[:, 0, :], hs[:, 1, :], focal)
    for got, ref in zip((pose, shape, transl, transl_c, depth_c), refs):
        assert got.shape == ref.shape
        assert jnp.allclose(got, ref, atol=2e-3, rtol=2e-3)

    assert pose.shape == (B, 132) and shape.shape == (B, 10)
    assert transl.shape == (B, 3) and transl_c.shape == (B, 2)
    assert depth_c.shape == (B, 1) and features.shape == (B, 2, C)
    print("KERNEL_OK")
</pallas_src>

<mosaic_0001>
module attributes {stable_mosaic.version = 11 : i64} {
  func.func @smpl_heads_kernel(%arg0: memref<1x1xf32, #tpu.memory_space<smem>>, %arg1: memref<8x64xbf16, #tpu.memory_space<vmem>>, %arg2: memref<64x128xbf16, #tpu.memory_space<vmem>>, %arg3: memref<128x384xbf16, #tpu.memory_space<vmem>>, %arg4: memref<1x512xf32, #tpu.memory_space<vmem>>, %arg5: memref<8x256xf32, #tpu.memory_space<vmem>>) attributes {dimension_semantics = [], scalar_prefetch = 0 : i64, scratch_operands = 0 : i64, tpu.core_type = #tpu.core_type<tc>} {
    %c0 = arith.constant 0 : index
    %c0_0 = arith.constant 0 : index
    %0 = vector.load %arg1[%c0, %c0_0] : memref<8x64xbf16, #tpu.memory_space<vmem>>, vector<8x64xbf16>
    %c0_1 = arith.constant 0 : index
    %c0_2 = arith.constant 0 : index
    %1 = vector.load %arg2[%c0_1, %c0_2] : memref<64x128xbf16, #tpu.memory_space<vmem>>, vector<64x128xbf16>
    %c0_3 = arith.constant 0 : index
    %c0_4 = arith.constant 0 : index
    %2 = vector.load %arg3[%c0_3, %c0_4] : memref<128x384xbf16, #tpu.memory_space<vmem>>, vector<128x128xbf16>
    %c0_5 = arith.constant 0 : index
    %c128 = arith.constant 128 : index
    %3 = vector.load %arg3[%c0_5, %c128] : memref<128x384xbf16, #tpu.memory_space<vmem>>, vector<128x256xbf16>
    %c0_6 = arith.constant 0 : index
    %c0_7 = arith.constant 0 : index
    %4 = vector.load %arg4[%c0_6, %c0_7] : memref<1x512xf32, #tpu.memory_space<vmem>>, vector<1x128xf32>
    %c0_8 = arith.constant 0 : index
    %c128_9 = arith.constant 128 : index
    %5 = vector.load %arg4[%c0_8, %c128_9] : memref<1x512xf32, #tpu.memory_space<vmem>>, vector<1x128xf32>
    %c0_10 = arith.constant 0 : index
    %c256 = arith.constant 256 : index
    %6 = vector.load %arg4[%c0_10, %c256] : memref<1x512xf32, #tpu.memory_space<vmem>>, vector<1x256xf32>
    %cst = arith.constant dense<0.000000e+00> : vector<8x128xf32>
    %7 = tpu.matmul %0, %1, %cst {dimension_numbers = #tpu.dot_dimension_numbers<[1], [0], [0], [1], [0, 0, 1, 1], [], []>} : vector<8x64xbf16>, vector<64x128xbf16>, vector<8x128xf32> -> vector<8x128xf32>
    %8 = vector.broadcast %4 : vector<1x128xf32> to vector<8x128xf32>
    %9 = arith.addf %7, %8 : vector<8x128xf32>
    %cst_11 = arith.constant 0.000000e+00 : f32
    %10 = vector.broadcast %cst_11 : f32 to vector<8x128xf32>
    %11 = arith.maximumf %9, %10 : vector<8x128xf32>
    %12 = arith.truncf %11 : vector<8x128xf32> to vector<8x128xbf16>
    %cst_12 = arith.constant dense<0.000000e+00> : vector<8x128xf32>
    %13 = tpu.matmul %12, %2, %cst_12 {dimension_numbers = #tpu.dot_dimension_numbers<[1], [0], [0], [1], [0, 0, 1, 1], [], []>} : vector<8x128xbf16>, vector<128x128xbf16>, vector<8x128xf32> -> vector<8x128xf32>
    %14 = vector.broadcast %5 : vector<1x128xf32> to vector<8x128xf32>
    %15 = arith.addf %13, %14 : vector<8x128xf32>
    %cst_13 = arith.constant 0.000000e+00 : f32
    %16 = vector.broadcast %cst_13 : f32 to vector<8x128xf32>
    %17 = arith.maximumf %15, %16 : vector<8x128xf32>
    %18 = arith.truncf %17 : vector<8x128xf32> to vector<8x128xbf16>
    %cst_14 = arith.constant dense<0.000000e+00> : vector<8x256xf32>
    %19 = tpu.matmul %18, %3, %cst_14 {dimension_numbers = #tpu.dot_dimension_numbers<[1], [0], [0], [1], [0, 0, 1, 1], [], []>} : vector<8x128xbf16>, vector<128x256xbf16>, vector<8x256xf32> -> vector<8x256xf32>
    %20 = vector.broadcast %6 : vector<1x256xf32> to vector<8x256xf32>
    %21 = arith.addf %19, %20 : vector<8x256xf32>
    %22 = tpu.iota {dimensions = array<i32: 1>} : vector<8x256xi32>
    %c142_i32 = arith.constant 142 : i32
    %23 = vector.broadcast %c142_i32 : i32 to vector<8x256xi32>
    %24 = arith.cmpi eq, %22, %23 : vector<8x256xi32>
    %cst_15 = arith.constant 0.000000e+00 : f32
    %25 = vector.broadcast %cst_15 : f32 to vector<8x256xf32>
    %26 = arith.select %24, %21, %25 : vector<8x256xi1>, vector<8x256xf32>
    %cst_16 = arith.constant dense<0.000000e+00> : vector<8xf32>
    %27 = vector.multi_reduction <add>, %26, %cst_16 [1] : vector<8x256xf32> to vector<8xf32>
    %28 = vector.shape_cast %27 : vector<8xf32> to vector<8x1xf32>
    %c143_i32 = arith.constant 143 : i32
    %29 = vector.broadcast %c143_i32 : i32 to vector<8x256xi32>
    %30 = arith.cmpi eq, %22, %29 : vector<8x256xi32>
    %cst_17 = arith.constant 0.000000e+00 : f32
    %31 = vector.broadcast %cst_17 : f32 to vector<8x256xf32>
    %32 = arith.select %30, %21, %31 : vector<8x256xi1>, vector<8x256xf32>
    %cst_18 = arith.constant dense<0.000000e+00> : vector<8xf32>
    %33 = vector.multi_reduction <add>, %32, %cst_18 [1] : vector<8x256xf32> to vector<8xf32>
    %34 = vector.shape_cast %33 : vector<8xf32> to vector<8x1xf32>
    %c144_i32 = arith.constant 144 : i32
    %35 = vector.broadcast %c144_i32 : i32 to vector<8x256xi32>
    %36 = arith.cmpi eq, %22, %35 : vector<8x256xi32>
    %cst_19 = arith.constant 0.000000e+00 : f32
    %37 = vector.broadcast %cst_19 : f32 to vector<8x256xf32>
    %38 = arith.select %36, %21, %37 : vector<8x256xi1>, vector<8x256xf32>
    %cst_20 = arith.constant dense<0.000000e+00> : vector<8xf32>
    %39 = vector.multi_reduction <add>, %38, %cst_20 [1] : vector<8x256xf32> to vector<8xf32>
    %40 = vector.shape_cast %39 : vector<8xf32> to vector<8x1xf32>
    %c0_21 = arith.constant 0 : index
    %c0_22 = arith.constant 0 : index
    %41 = memref.load %arg0[%c0_21, %c0_22] : memref<1x1xf32, #tpu.memory_space<smem>>
    %42 = arith.mulf %28, %40 : vector<8x1xf32>
    %43 = arith.mulf %34, %40 : vector<8x1xf32>
    %cst_23 = arith.constant 1.000000e-03 : f32
    %44 = arith.mulf %41, %cst_23 : f32
    %45 = vector.broadcast %44 : f32 to vector<8x1xf32>
    %46 = arith.mulf %40, %45 : vector<8x1xf32>
    %c145_i32 = arith.constant 145 : i32
    %47 = vector.broadcast %c145_i32 : i32 to vector<8x256xi32>
    %48 = arith.cmpi eq, %22, %47 : vector<8x256xi32>
    %c146_i32 = arith.constant 146 : i32
    %49 = vector.broadcast %c146_i32 : i32 to vector<8x256xi32>
    %50 = arith.cmpi eq, %22, %49 : vector<8x256xi32>
    %51 = vector.shape_cast %43 : vector<8x1xf32> to vector<8x1xf32>
    %52 = vector.broadcast %51 : vector<8x1xf32> to vector<8x256xf32>
    %53 = vector.shape_cast %46 : vector<8x1xf32> to vector<8x1xf32>
    %54 = vector.broadcast %53 : vector<8x1xf32> to vector<8x256xf32>
    %55 = arith.select %50, %52, %54 : vector<8x256xi1>, vector<8x256xf32>
    %56 = vector.shape_cast %42 : vector<8x1xf32> to vector<8x1xf32>
    %57 = vector.broadcast %56 : vector<8x1xf32> to vector<8x256xf32>
    %58 = arith.select %48, %57, %55 : vector<8x256xi1>, vector<8x256xf32>
    %c145_i32_24 = arith.constant 145 : i32
    %59 = vector.broadcast %c145_i32_24 : i32 to vector<8x256xi32>
    %60 = arith.cmpi slt, %22, %59 : vector<8x256xi32>
    %c148_i32 = arith.constant 148 : i32
    %61 = vector.broadcast %c148_i32 : i32 to vector<8x256xi32>
    %62 = arith.cmpi slt, %22, %61 : vector<8x256xi32>
    %cst_25 = arith.constant 0.000000e+00 : f32
    %63 = vector.broadcast %cst_25 : f32 to vector<8x256xf32>
    %64 = arith.select %62, %58, %63 : vector<8x256xi1>, vector<8x256xf32>
    %65 = arith.select %60, %21, %64 : vector<8x256xi1>, vector<8x256xf32>
    %c0_26 = arith.constant 0 : index
    %c0_27 = arith.constant 0 : index
    %66 = vector.load %arg5[%c0_26, %c0_27] : memref<8x256xf32, #tpu.memory_space<vmem>>, vector<8x256xf32>
    tpu.vector_store %arg5[%c0_26, %c0_27], %65 {strides = array<i32>} : memref<8x256xf32, #tpu.memory_space<vmem>>, vector<8x256xf32>,
    return
  }
}

</mosaic_0001>

<llo_original>
// kernel: tpu_custom_call.1
$region0: #{tpu_custom_call.1}
  #allocation0 [shape = 'u32[]', space=smem, size = 0x4, offset = 0x4, fixed_abs, tag = 'smem constant byte address 0x4 - core index']
  #allocation1 [shape = 'u32[144,128]{1,0:T(1,128)}', space=vmem, size = 0x12000, scoped, tag = 'internal scratch']
  #allocation2 [shape = 'f32[1,1]{1,0:T(1,128)S(6)}', space=smem, size = 0x200, scoped, tag = 'scoped memory for tpu_custom_call.1']
  %s0 = inlined_call_operand.<no memory space> [shape: f32[1,1], index: 0, kind: input, shape index: {}]
  %s1 = inlined_call_operand.hbm [shape: bf16[8,64], index: 1, kind: input, shape index: {}]
  %s2 = inlined_call_operand.hbm [shape: bf16[64,128], index: 2, kind: input, shape index: {}]
  %s3 = inlined_call_operand.hbm [shape: bf16[128,384], index: 3, kind: input, shape index: {}]
  %s4 = inlined_call_operand.vmem [shape: f32[1,512], index: 4, kind: input, shape index: {}]
  %s5 = inlined_call_operand.hbm [shape: f32[8,256], index: 5, kind: output, shape index: {}]
  %s6 = sld [smem:[#allocation0]]
  $region42: #{tpu_custom_call.1} parent=0
    _
  %s8 = ssub.s32 1, %s6
  %s9 = scalar_select 0, %s8, %s6
  %10 = sst [smem:[#allocation2]] %s0
  $region1: #{tpu_custom_call.1} parent=0
    #allocation3 [shape = 'u8[2048]{0}', space=vmem, size = 0x800, scoped, tag = 'input window, operand 1, single buffered']
    #allocation4 [shape = 's32[1]{0}', space=sflag, size = 0x4, scoped, tag = 'scoped memory for tpu_custom_call.1']
    #allocation5 [shape = 's32[1]{0}', space=sflag, size = 0x4, scoped, tag = 'scoped memory for tpu_custom_call.1']
    #allocation6 [shape = 'u8[16384]{0}', space=vmem, size = 0x4000, scoped, tag = 'input window, operand 2, single buffered']
    #allocation7 [shape = 's32[1]{0}', space=sflag, size = 0x4, scoped, tag = 'scoped memory for tpu_custom_call.1']
    #allocation8 [shape = 'u8[98304]{0}', space=vmem, size = 0x18000, scoped, tag = 'input window, operand 3, single buffered']
    #allocation9 [shape = 'u8[8192]{0}', space=vmem, size = 0x2000, scoped, tag = 'output window, operand 0, single buffered']
    %11 = vsyncpa [#allocation4], 0
    %12 = vsyncpa [#allocation7], 0
    %13 = vsyncpa [#allocation5], 0
    // Predicated region
    $region2: #{tpu_custom_call.1} parent=1 // pred_check
      _
    $region3: #{tpu_custom_call.1} parent=1 // pred_check_branch
      %15 = sbr.rel (0) target = $region5
    $region4: #{tpu_custom_call.1} parent=1 // pred_region
      _
    $region5: #{tpu_custom_call.1} parent=1 // pred_fallthru
      _
    // Predicated region
    $region6: #{tpu_custom_call.1} parent=1 // pred_check
      _
    $region7: #{tpu_custom_call.1} parent=1 // pred_check_branch
      %17 = sbr.rel (0) target = $region9
    $region8: #{tpu_custom_call.1} parent=1 // pred_region
      %s19 = ssub.s32 64, 64
      %20 = vsyncadd [#allocation4], %s19
      %s22 = sshll.u32 [#allocation3], 4
      %s23 = int_to_ptr.vmem [resolvable:$true] %s22
      %25 = dma.hbm_to_vmem [thread:$0]  %s1, 64, %s23, [#allocation4]
    $region9: #{tpu_custom_call.1} parent=1 // pred_fallthru
      _
    // Predicated region
    $region10: #{tpu_custom_call.1} parent=1 // pred_check
      _
    $region11: #{tpu_custom_call.1} parent=1 // pred_check_branch
      %27 = sbr.rel (0) target = $region13
    $region12: #{tpu_custom_call.1} parent=1 // pred_region
      %s29 = ssub.s32 512, 512
      %30 = vsyncadd [#allocation7], %s29
      %s31 = sshll.u32 [#allocation6], 4
      %s32 = int_to_ptr.vmem [resolvable:$true] %s31
      %37 = dma.hbm_to_vmem [thread:$0]  %s2, 512, %s32, [#allocation7], 64, 64, 4
    $region13: #{tpu_custom_call.1} parent=1 // pred_fallthru
      _
    // Predicated region
    $region14: #{tpu_custom_call.1} parent=1 // pred_check
      _
    $region15: #{tpu_custom_call.1} parent=1 // pred_check_branch
      %39 = sbr.rel (0) target = $region17
    $region16: #{tpu_custom_call.1} parent=1 // pred_region
      %s41 = ssub.s32 3072, 3072
      %42 = vsyncadd [#allocation7], %s41
      %s43 = sshll.u32 [#allocation8], 4
      %s44 = int_to_ptr.vmem [resolvable:$true] %s43
      %49 = dma.hbm_to_vmem [thread:$0]  %s3, 3072, %s44, [#allocation7], 192, 192, 12
    $region17: #{tpu_custom_call.1} parent=1 // pred_fallthru
      _
    // Predicated region
    $region18: #{tpu_custom_call.1} parent=1 // pred_check
      _
    $region19: #{tpu_custom_call.1} parent=1 // pred_check_branch
      %51 = sbr.rel (0) target = $region21
    $region20: #{tpu_custom_call.1} parent=1 // pred_region
      _
    $region21: #{tpu_custom_call.1} parent=1 // pred_fallthru
      _
    // Predicated region
    $region22: #{tpu_custom_call.1} parent=1 // pred_check
      _
    $region23: #{tpu_custom_call.1} parent=1 // pred_check_branch
      %53 = sbr.rel (0) target = $region25
    $region24: #{tpu_custom_call.1} parent=1 // pred_region
      %54 = dma.done [#allocation4], 64
    $region25: #{tpu_custom_call.1} parent=1 // pred_fallthru
      _
    // Predicated region
    $region26: #{tpu_custom_call.1} parent=1 // pred_check
      _
    $region27: #{tpu_custom_call.1} parent=1 // pred_check_branch
      %56 = sbr.rel (0) target = $region29
    $region28: #{tpu_custom_call.1} parent=1 // pred_region
      %57 = dma.done [#allocation7], 512
    $region29: #{tpu_custom_call.1} parent=1 // pred_fallthru
      _
    // Predicated region
    $region30: #{tpu_custom_call.1} parent=1 // pred_check
      _
    $region31: #{tpu_custom_call.1} parent=1 // pred_check_branch
      %59 = sbr.rel (0) target = $region33
    $region32: #{tpu_custom_call.1} parent=1 // pred_region
      %60 = dma.done [#allocation7], 3072
    $region33: #{tpu_custom_call.1} parent=1 // pred_fallthru
      _
    %v62 = vld [vmem:[#allocation3] sm:$0xf]
    %v63 = vld [vmem:[#allocation6] sm:$0xf]
    %v64 = vld [vmem:[#allocation6 + $0x4] sm:$0xf]
    %v65 = vld [vmem:[#allocation6 + $0x8] sm:$0xf]
    %v66 = vld [vmem:[#allocation6 + $0xc] sm:$0xf]
    %v67 = vld [vmem:[#allocation6 + $0x10] sm:$0xf]
    %v68 = vld [vmem:[#allocation6 + $0x14] sm:$0xf]
    %v69 = vld [vmem:[#allocation6 + $0x18] sm:$0xf]
    %v70 = vld [vmem:[#allocation6 + $0x1c] sm:$0xf]
    %v71 = vld [vmem:[#allocation8] sm:$0xf]
    %v72 = vld [vmem:[#allocation8 + $0xc] sm:$0xf]
    %v73 = vld [vmem:[#allocation8 + $0x18] sm:$0xf]
    %v74 = vld [vmem:[#allocation8 + $0x24] sm:$0xf]
    %v75 = vld [vmem:[#allocation8 + $0x30] sm:$0xf]
    %v76 = vld [vmem:[#allocation8 + $0x3c] sm:$0xf]
    %v77 = vld [vmem:[#allocation8 + $0x48] sm:$0xf]
    %v78 = vld [vmem:[#allocation8 + $0x54] sm:$0xf]
    %v79 = vld [vmem:[#allocation8 + $0x60] sm:$0xf]
    %v80 = vld [vmem:[#allocation8 + $0x6c] sm:$0xf]
    %v81 = vld [vmem:[#allocation8 + $0x78] sm:$0xf]
    %v82 = vld [vmem:[#allocation8 + $0x84] sm:$0xf]
    %v83 = vld [vmem:[#allocation8 + $0x90] sm:$0xf]
    %v84 = vld [vmem:[#allocation8 + $0x9c] sm:$0xf]
    %v85 = vld [vmem:[#allocation8 + $0xa8] sm:$0xf]
    %v86 = vld [vmem:[#allocation8 + $0xb4] sm:$0xf]
    %v87 = vld [vmem:[#allocation8 + $0x4] sm:$0xff]
    %v88 = vld [vmem:[#allocation8 + $0x10] sm:$0xff]
    %v89 = vld [vmem:[#allocation8 + $0x1c] sm:$0xff]
    %v90 = vld [vmem:[#allocation8 + $0x28] sm:$0xff]
    %v91 = vld [vmem:[#allocation8 + $0x34] sm:$0xff]
    %v92 = vld [vmem:[#allocation8 + $0x40] sm:$0xff]
    %v93 = vld [vmem:[#allocation8 + $0x4c] sm:$0xff]
    %v94 = vld [vmem:[#allocation8 + $0x58] sm:$0xff]
    %v95 = vld [vmem:[#allocation8 + $0x64] sm:$0xff]
    %v96 = vld [vmem:[#allocation8 + $0x70] sm:$0xff]
    %v97 = vld [vmem:[#allocation8 + $0x7c] sm:$0xff]
    %v98 = vld [vmem:[#allocation8 + $0x88] sm:$0xff]
    %v99 = vld [vmem:[#allocation8 + $0x94] sm:$0xff]
    %v100 = vld [vmem:[#allocation8 + $0xa0] sm:$0xff]
    %v101 = vld [vmem:[#allocation8 + $0xac] sm:$0xff]
    %v102 = vld [vmem:[#allocation8 + $0xb8] sm:$0xff]
    %v103 = vld [vmem:[%s4] sm:$0x1]
    %v104 = vld [vmem:[%s4 + $0x1] sm:$0x1]
    %v105 = vld [vmem:[%s4 + $0x2] sm:$0x3]
    %v107 = vlaneseq
    %v108 = vshrl.u32 %v107, 7
    %v109 = vsub.s32 0, %v108
    %v110 = vrot.slane %v103, %v109
    %v120 = vunpack.c.l.b16 %v63
    %v121 = vunpack.c.l.b16 %v64
    %v122 = vunpack.c.l.b16 %v65
    %v123 = vunpack.c.l.b16 %v66
    %v124 = vunpack.c.l.b16 %v67
    %v125 = vunpack.c.l.b16 %v68
    %v126 = vunpack.c.l.b16 %v69
    %v127 = vunpack.c.l.b16 %v70
    %v128 = vpack.c.b16 %v121, %v120
    %v129 = vpack.c.b16 %v123, %v122
    %v130 = vpack.c.b16 %v125, %v124
    %v131 = vpack.c.b16 %v127, %v126
    %vm136 = vcmask 523264
    %v138 = vsel %vm136, %v62, 0
    %140 = vmatprep.subr.bf16.mxu0 0
    %141 = vmatpush1.bf16.msra.mxu0 %v128
    %142 = vmatprep.subr.bf16.mxu0 0
    %143 = vmatpush1.bf16.msra.mxu0 %v129
    %144 = vmatprep.subr.bf16.mxu0 0
    %145 = vmatpush1.bf16.msra.mxu0 %v130
    %146 = vmatprep.subr.bf16.mxu0 0
    %147 = vmatpush1.bf16.msra.mxu0 %v131
    %148 = vmatprep.subr.bf16.mxu0 0
    %149 = vmatpush1.bf16.msra.mxu0 0
    %150 = vmatprep.subr.bf16.mxu0 0
    %151 = vmatpush1.bf16.msra.mxu0 0
    %152 = vmatprep.subr.bf16.mxu0 0
    %153 = vmatpush1.bf16.msra.mxu0 0
    %154 = vmatprep.subr.bf16.mxu0 0
    %155 = vmatpush1.bf16.msra.mxu0 0
    %156 = vmatprep.subr.bf16.mxu0 0
    %157 = vmatpush1.bf16.msra.mxu0 0
    %158 = vmatprep.subr.bf16.mxu0 0
    %159 = vmatpush1.bf16.msra.mxu0 0
    %160 = vmatprep.subr.bf16.mxu0 0
    %161 = vmatpush1.bf16.msra.mxu0 0
    %162 = vmatprep.subr.bf16.mxu0 0
    %163 = vmatpush1.bf16.msra.mxu0 0
    %164 = vmatprep.subr.bf16.mxu0 0
    %165 = vmatpush1.bf16.msra.mxu0 0
    %166 = vmatprep.subr.bf16.mxu0 0
    %167 = vmatpush1.bf16.msra.mxu0 0
    %168 = vmatprep.subr.bf16.mxu0 0
    %169 = vmatpush1.bf16.msra.mxu0 0
    %170 = vmatprep.subr.bf16.mxu0 0
    %171 = vmatpush1.bf16.msra.mxu0 0
    %172 = vmatprep.mubr.bf16.mxu0 0
    %173 = vmatmul.mubr.bf16.gmra.mrb[0].mxu0 %v138
    %v174 = vpop.f32.mrb[0].mxu0
    %v175 = vadd.f32 %v110, %v174
    %v176 = vpop.f32.mrb[0].mxu0
    %v177 = vpop.f32.mrb[0].mxu0
    %v178 = vpop.f32.mrb[0].mxu0
    %179 = vdwg.mxu0
    %v180 = vmax.f32 %v175, 0.0
    %v181 = vpack.c.bf16 %v180, %v180
    %v183 = vlaneseq
    %v184 = vshrl.u32 %v183, 7
    %v185 = vsub.s32 0, %v184
    %v186 = vrot.slane %v104, %v185
    %v204 = vunpack.c.l.b16 %v71
    %v205 = vunpack.c.l.b16 %v72
    %v206 = vunpack.c.l.b16 %v73
    %v207 = vunpack.c.l.b16 %v74
    %v208 = vunpack.c.l.b16 %v75
    %v209 = vunpack.c.l.b16 %v76
    %v210 = vunpack.c.l.b16 %v77
    %v211 = vunpack.c.l.b16 %v78
    %v212 = vunpack.c.l.b16 %v79
    %v213 = vunpack.c.l.b16 %v80
    %v214 = vunpack.c.l.b16 %v81
    %v215 = vunpack.c.l.b16 %v82
    %v216 = vunpack.c.l.b16 %v83
    %v217 = vunpack.c.l.b16 %v84
    %v218 = vunpack.c.l.b16 %v85
    %v219 = vunpack.c.l.b16 %v86
    %v220 = vpack.c.b16 %v205, %v204
    %v221 = vpack.c.b16 %v207, %v206
    %v222 = vpack.c.b16 %v209, %v208
    %v223 = vpack.c.b16 %v211, %v210
    %v224 = vpack.c.b16 %v213, %v212
    %v225 = vpack.c.b16 %v215, %v214
    %v226 = vpack.c.b16 %v217, %v216
    %v227 = vpack.c.b16 %v219, %v218
    %236 = vmatprep.subr.bf16.mxu0 0
    %237 = vmatpush1.bf16.msra.mxu0 %v220
    %238 = vmatprep.subr.bf16.mxu0 0
    %239 = vmatpush1.bf16.msra.mxu0 %v221
    %240 = vmatprep.subr.bf16.mxu0 0
    %241 = vmatpush1.bf16.msra.mxu0 %v222
    %242 = vmatprep.subr.bf16.mxu0 0
    %243 = vmatpush1.bf16.msra.mxu0 %v223
    %244 = vmatprep.subr.bf16.mxu0 0
    %245 = vmatpush1.bf16.msra.mxu0 %v224
    %246 = vmatprep.subr.bf16.mxu0 0
    %247 = vmatpush1.bf16.msra.mxu0 %v225
    %248 = vmatprep.subr.bf16.mxu0 0
    %249 = vmatpush1.bf16.msra.mxu0 %v226
    %250 = vmatprep.subr.bf16.mxu0 0
    %251 = vmatpush1.bf16.msra.mxu0 %v227
    %252 = vmatprep.subr.bf16.mxu0 0
    %253 = vmatpush1.bf16.msra.mxu0 0
    %254 = vmatprep.subr.bf16.mxu0 0
    %255 = vmatpush1.bf16.msra.mxu0 0
    %256 = vmatprep.subr.bf16.mxu0 0
    %257 = vmatpush1.bf16.msra.mxu0 0
    %258 = vmatprep.subr.bf16.mxu0 0
    %259 = vmatpush1.bf16.msra.mxu0 0
    %260 = vmatprep.subr.bf16.mxu0 0
    %261 = vmatpush1.bf16.msra.mxu0 0
    %262 = vmatprep.subr.bf16.mxu0 0
    %263 = vmatpush1.bf16.msra.mxu0 0
    %264 = vmatprep.subr.bf16.mxu0 0
    %265 = vmatpush1.bf16.msra.mxu0 0
    %266 = vmatprep.subr.bf16.mxu0 0
    %267 = vmatpush1.bf16.msra.mxu0 0
    %268 = vmatprep.mubr.bf16.mxu0 0
    %269 = vmatmul.mubr.bf16.gmra.mrb[0].mxu0 %v181
    %v270 = vpop.f32.mrb[0].mxu0
    %v271 = vadd.f32 %v186, %v270
    %v272 = vpop.f32.mrb[0].mxu0
    %v273 = vpop.f32.mrb[0].mxu0
    %v274 = vpop.f32.mrb[0].mxu0
    %275 = vdwg.mxu0
    %v276 = vmax.f32 %v271, 0.0
    %v277 = vpack.c.bf16 %v276, %v276
    %v279 = vlaneseq
    %v280 = vshrl.u32 %v279, 7
    %v281 = vsub.s32 0, %v280
    %v282 = vrot.slane %v105, %v281
    %v283 = vlaneseq
    %v284 = vshrl.u32 %v283, 7
    %v285 = vsub.s32 1, %v284
    %v286 = vrot.slane %v105, %v285
    %v305 = vunpack.c.l.b16 %v87
    %v306 = vunpack.c.h.b16 %v87
    %v307 = vunpack.c.l.b16 %v88
    %v308 = vunpack.c.h.b16 %v88
    %v309 = vunpack.c.l.b16 %v89
    %v310 = vunpack.c.h.b16 %v89
    %v311 = vunpack.c.l.b16 %v90
    %v312 = vunpack.c.h.b16 %v90
    %v313 = vunpack.c.l.b16 %v91
    %v314 = vunpack.c.h.b16 %v91
    %v315 = vunpack.c.l.b16 %v92
    %v316 = vunpack.c.h.b16 %v92
    %v317 = vunpack.c.l.b16 %v93
    %v318 = vunpack.c.h.b16 %v93
    %v319 = vunpack.c.l.b16 %v94
    %v320 = vunpack.c.h.b16 %v94
    %v321 = vunpack.c.l.b16 %v95
    %v322 = vunpack.c.h.b16 %v95
    %v323 = vunpack.c.l.b16 %v96
    %v324 = vunpack.c.h.b16 %v96
    %v325 = vunpack.c.l.b16 %v97
    %v326 = vunpack.c.h.b16 %v97
    %v327 = vunpack.c.l.b16 %v98
    %v328 = vunpack.c.h.b16 %v98
    %v329 = vunpack.c.l.b16 %v99
    %v330 = vunpack.c.h.b16 %v99
    %v331 = vunpack.c.l.b16 %v100
    %v332 = vunpack.c.h.b16 %v100
    %v333 = vunpack.c.l.b16 %v101
    %v334 = vunpack.c.h.b16 %v101
    %v335 = vunpack.c.l.b16 %v102
    %v336 = vunpack.c.h.b16 %v102
    %v337 = vpack.c.b16 %v307, %v305
    %v338 = vpack.c.b16 %v308, %v306
    %v339 = vpack.c.b16 %v311, %v309
    %v340 = vpack.c.b16 %v312, %v310
    %v341 = vpack.c.b16 %v315, %v313
    %v342 = vpack.c.b16 %v316, %v314
    %v343 = vpack.c.b16 %v319, %v317
    %v344 = vpack.c.b16 %v320, %v318
    %v345 = vpack.c.b16 %v323, %v321
    %v346 = vpack.c.b16 %v324, %v322
    %v347 = vpack.c.b16 %v327, %v325
    %v348 = vpack.c.b16 %v328, %v326
    %v349 = vpack.c.b16 %v331, %v329
    %v350 = vpack.c.b16 %v332, %v330
    %v351 = vpack.c.b16 %v335, %v333
    %v352 = vpack.c.b16 %v336, %v334
    %369 = vmatprep.subr.bf16.mxu0 %v338
    %370 = vmatpush1.bf16.msra.mxu0 %v337
    %371 = vmatprep.subr.bf16.mxu0 %v340
    %372 = vmatpush1.bf16.msra.mxu0 %v339
    %373 = vmatprep.subr.bf16.mxu0 %v342
    %374 = vmatpush1.bf16.msra.mxu0 %v341
    %375 = vmatprep.subr.bf16.mxu0 %v344
    %376 = vmatpush1.bf16.msra.mxu0 %v343
    %377 = vmatprep.subr.bf16.mxu0 %v346
    %378 = vmatpush1.bf16.msra.mxu0 %v345
    %379 = vmatprep.subr.bf16.mxu0 %v348
    %380 = vmatpush1.bf16.msra.mxu0 %v347
    %381 = vmatprep.subr.bf16.mxu0 %v350
    %382 = vmatpush1.bf16.msra.mxu0 %v349
    %383 = vmatprep.subr.bf16.mxu0 %v352
    %384 = vmatpush1.bf16.msra.mxu0 %v351
    %385 = vmatprep.subr.bf16.mxu0 0
    %386 = vmatpush1.bf16.msra.mxu0 0
    %387 = vmatprep.subr.bf16.mxu0 0
    %388 = vmatpush1.bf16.msra.mxu0 0
    %389 = vmatprep.subr.bf16.mxu0 0
    %390 = vmatpush1.bf16.msra.mxu0 0
    %391 = vmatprep.subr.bf16.mxu0 0
    %392 = vmatpush1.bf16.msra.mxu0 0
    %393 = vmatprep.subr.bf16.mxu0 0
    %394 = vmatpush1.bf16.msra.mxu0 0
    %395 = vmatprep.subr.bf16.mxu0 0
    %396 = vmatpush1.bf16.msra.mxu0 0
    %397 = vmatprep.subr.bf16.mxu0 0
    %398 = vmatpush1.bf16.msra.mxu0 0
    %399 = vmatprep.subr.bf16.mxu0 0
    %400 = vmatpush1.bf16.msra.mxu0 0
    %401 = vmatprep.mubr.bf16.mxu0 0
    %402 = vmatmul.mubr.bf16.gmra.mrb[0].mxu0 %v277
    %v403 = vpop.f32.mrb[0].mxu0
    %v404 = vadd.f32 %v282, %v403
    %v405 = vpop.f32.mrb[0].mxu0
    %v406 = vadd.f32 %v286, %v405
    %v407 = vpop.f32.mrb[0].mxu0
    %v408 = vpop.f32.mrb[0].mxu0
    %409 = vdwg.mxu0
    %v410 = vlaneseq
    %v411 = vand.u32 %v410, 127
    %v412 = vadd.s32 %v411, 128
    %vm413 = vcmp.eq.s32.totalorder %v411, 142
    %vm414 = vcmp.eq.s32.totalorder %v412, 142
    %v415 = vsel %vm413, %v404, 0.0
    %v416 = vsel %vm414, %v406, 0.0
    %v417 = vadd.f32 %v415, %v416
    %418 = vadd.xlane.f32.xlu0 %v417
    %v419 = vpop.xlane.xlu0 %418
    %vm420 = vcmp.eq.s32.totalorder %v411, 143
    %vm421 = vcmp.eq.s32.totalorder %v412, 143
    %v422 = vsel %vm420, %v404, 0.0
    %v423 = vsel %vm421, %v406, 0.0
    %v424 = vadd.f32 %v422, %v423
    %425 = vadd.xlane.f32.xlu0 %v424
    %v426 = vpop.xlane.xlu0 %425
    %vm427 = vcmp.eq.s32.totalorder %v411, 144
    %vm428 = vcmp.eq.s32.totalorder %v412, 144
    %v429 = vsel %vm427, %v404, 0.0
    %v430 = vsel %vm428, %v406, 0.0
    %v431 = vadd.f32 %v429, %v430
    %432 = vadd.xlane.f32.xlu0 %v431
    %v433 = vpop.xlane.xlu0 %432
    %s434 = sld [smem:[#allocation2]]
    %v435 = vmul.f32 %v419, %v433
    %v436 = vmul.f32 %v426, %v433
    %s437 = smul.f32 %s434, 0.001
    %v438 = vstv %s437
    %v439 = vmul.f32 %v433, %v438
    %vm440 = vcmp.eq.s32.totalorder %v411, 145
    %vm441 = vcmp.eq.s32.totalorder %v412, 145
    %vm442 = vcmp.eq.s32.totalorder %v411, 146
    %vm443 = vcmp.eq.s32.totalorder %v412, 146
    %v444 = vsel %vm442, %v436, %v439
    %v445 = vsel %vm443, %v436, %v439
    %v446 = vsel %vm440, %v435, %v444
    %v447 = vsel %vm441, %v435, %v445
    %vm448 = vcmp.lt.s32.totalorder %v411, 145
    %vm449 = vcmp.lt.s32.totalorder %v412, 145
    %vm450 = vcmp.lt.s32.totalorder %v411, 148
    %vm451 = vcmp.lt.s32.totalorder %v412, 148
    %v452 = vsel %vm450, %v446, 0.0
    %v453 = vsel %vm451, %v447, 0.0
    %v454 = vsel %vm448, %v404, %v452
    %v455 = vsel %vm449, %v406, %v453
    %456 = vst [vmem:[#allocation9] sm:$0xff] %v454
    %457 = vst [vmem:[#allocation9 + $0x8] sm:$0xff] %v455
    // Predicated region
    $region34: #{tpu_custom_call.1} parent=1 // pred_check
      _
    $region35: #{tpu_custom_call.1} parent=1 // pred_check_branch
      %459 = sbr.rel (0) target = $region37
    $region36: #{tpu_custom_call.1} parent=1 // pred_region
      %s461 = ssub.s32 256, 256
      %462 = vsyncadd [#allocation5], %s461
      %s464 = sshll.u32 [#allocation9], 4
      %s465 = int_to_ptr.vmem [resolvable:$true] %s464
      %467 = dma.vmem_to_hbm [thread:$0]  %s465, 256, %s5, [#allocation5]
    $region37: #{tpu_custom_call.1} parent=1 // pred_fallthru
      _
    // Predicated region
    $region38: #{tpu_custom_call.1} parent=1 // pred_check
      _
    $region39: #{tpu_custom_call.1} parent=1 // pred_check_branch
      %469 = sbr.rel (0) target = $region41
    $region40: #{tpu_custom_call.1} parent=1 // pred_region
      %470 = dma.done [#allocation5], 256
    $region41: #{tpu_custom_call.1} parent=1 // pred_fallthru
      _
    %471 = vsyncpa [#allocation4], 1
    %472 = vsyncpa [#allocation7], 1
    %473 = vsyncpa [#allocation5], 1

</llo_original>
